<compile_context>
chip_gen: v7x
topology: tpu7x:2x2x1
jax: 0.10.0
libtpu: 0.0.40
codegen_flags: <defaults>
</compile_context>

<pallas_src>
import jax
import jax.numpy as jnp
from jax.experimental import pallas as pl
from jax.experimental.pallas import tpu as pltpu


def _round_up(x, m):
    return ((x + m - 1) // m) * m


def _row_gather_kernel(labels_ref, table_hbm, out_ref, copy_sems):
    # labels_ref: SMEM int32 (B_pad,)  -- scalar-prefetched labels
    # table_hbm : HBM  f32   (V, H)    -- raw table ref (memory_space=pl.ANY)
    # out_ref   : VMEM f32   (TB, H)   -- this grid step's output tile
    # copy_sems : DMA semaphores (TB,)
    i = pl.program_id(0)
    tb = out_ref.shape[0]

    # Issue all TB row copies (HBM table row -> output VMEM row); TB is static
    # so the Python loop fully unrolls and the DMAs overlap in flight.
    for r in range(tb):
        lbl = labels_ref[i * tb + r]
        pltpu.make_async_copy(
            table_hbm.at[lbl], out_ref.at[r], copy_sems.at[r]
        ).start()

    # Then wait for each row (descriptor src index is irrelevant for the wait;
    # only the destination shape / semaphore matter).
    for r in range(tb):
        pltpu.make_async_copy(
            table_hbm.at[0], out_ref.at[r], copy_sems.at[r]
        ).wait()


def embedding_gather(labels, table, *, max_tile=128):
    """Pallas embedding lookup: table[labels] (labels: int[B], table: f32[V, H])."""
    B = labels.shape[0]
    V, H = table.shape
    labels = labels.astype(jnp.int32)

    # Tile size: multiple of 8 (sublane granularity), at most max_tile.
    tb = min(max_tile, _round_up(B, 8))
    b_pad = _round_up(B, tb)
    if b_pad != B:
        labels = jnp.pad(labels, (0, b_pad - B))  # pad with a valid row (0)

    # TODO(synk): for the B >> V regime an amortized resident-table path
    # (single-buffered via pl.Buffered(1)) could beat B tiny row DMAs.

    grid_spec = pltpu.PrefetchScalarGridSpec(
        num_scalar_prefetch=1,
        grid=(b_pad // tb,),
        in_specs=[
            # Embedding table stays in HBM; rows are gathered by manual DMA.
            pl.BlockSpec(memory_space=pl.ANY),
        ],
        out_specs=pl.BlockSpec((tb, H), lambda i, lbl: (i, 0)),
        scratch_shapes=[pltpu.SemaphoreType.DMA((tb,))],
    )

    out = pl.pallas_call(
        _row_gather_kernel,
        out_shape=jax.ShapeDtypeStruct((b_pad, H), table.dtype),
        grid_spec=grid_spec,
        compiler_params=pltpu.CompilerParams(
            # Grid is typically 1-2 steps for embedding lookups; megacore
            # sharding buys nothing here.
            dimension_semantics=("arbitrary",),
        ),
    )(labels, table)

    return out[:B]


class LabelEmbedder:
    """JAX/Pallas port of the PyTorch LabelEmbedder module."""

    def __init__(self, num_classes, hidden_size, dropout_prob, key):
        self.num_classes = num_classes
        self.dropout_prob = dropout_prob
        use_cfg_embedding = int(dropout_prob > 0)
        # nn.Embedding default init is N(0, 1); match shape + distribution.
        self.embedding_table = jax.random.normal(
            key, (num_classes + use_cfg_embedding, hidden_size), dtype=jnp.float32
        )

    def token_drop(self, labels, drop_key, force_drop_ids=None):
        if force_drop_ids is None:
            drop_ids = (
                jax.random.uniform(drop_key, (labels.shape[0],)) < self.dropout_prob
            )
        else:
            drop_ids = force_drop_ids == 1
        labels = jnp.where(drop_ids, self.num_classes, labels)
        return labels

    def __call__(self, labels, train, drop_key=None, force_drop_ids=None):
        use_dropout = self.dropout_prob > 0
        if (train and use_dropout) or (force_drop_ids is not None):
            labels = self.token_drop(labels, drop_key, force_drop_ids)
        # Embedding lookup runs inside the Pallas kernel (pure DMA row gather).
        return embedding_gather(labels, self.embedding_table)


if __name__ == "__main__":
    key = jax.random.PRNGKey(0)
    k_table, k_labels, k_drop = jax.random.split(key, 3)

    num_classes = 10
    hidden_size = 128
    dropout_prob = 0.1
    batch = 8

    embedder = LabelEmbedder(num_classes, hidden_size, dropout_prob, k_table)

    labels = jax.random.randint(k_labels, (batch,), 0, num_classes, dtype=jnp.int32)

    out = embedder(labels, train=True, drop_key=k_drop)
    out = jax.block_until_ready(out)

    # Reference check (pure JAX) with identical dropped labels.
    dropped = embedder.token_drop(labels, k_drop)
    ref = embedder.embedding_table[dropped]
    assert out.shape == (batch, hidden_size)
    assert jnp.array_equal(out, ref), "Pallas gather mismatch vs reference"

    # Eval path (no dropout) check as well.
    out_eval = jax.block_until_ready(embedder(labels, train=False))
    assert jnp.array_equal(out_eval, embedder.embedding_table[labels])

    print("KERNEL_OK")
</pallas_src>

<mosaic_0001>
module attributes {stable_mosaic.version = 11 : i64} {
  func.func @_row_gather_kernel(%arg0: i32, %arg1: memref<8xi32, #tpu.memory_space<smem>>, %arg2: memref<11x128xf32, #tpu.memory_space<any>>, %arg3: memref<8x128xf32, #tpu.memory_space<vmem>>, %arg4: memref<8x!tpu.dma_semaphore, #tpu.memory_space<semaphore_mem>>) attributes {dimension_semantics = [#tpu.dimension_semantics<arbitrary>], iteration_bounds = array<i64: 1>, scalar_prefetch = 1 : i64, scratch_operands = 1 : i64, tpu.core_type = #tpu.core_type<tc>, window_params = [{}, {transform_indices = @transform_1, window_bounds = array<i64: 8, 128>}]} {
    %c8_i32 = arith.constant 8 : i32
    %0 = arith.muli %arg0, %c8_i32 : i32
    %c0_i32 = arith.constant 0 : i32
    %1 = arith.addi %0, %c0_i32 : i32
    %2 = arith.index_cast %1 : i32 to index
    %3 = memref.load %arg1[%2] : memref<8xi32, #tpu.memory_space<smem>>
    %c0_i32_0 = arith.constant 0 : i32
    %c0_i32_1 = arith.constant 0 : i32
    %c0_i32_2 = arith.constant 0 : i32
    %4 = tpu.memref_slice %arg2[%3, %c0_i32_2] : memref<11x128xf32, #tpu.memory_space<any>> -> memref<1x128xf32, #tpu.memory_space<any>>
    %5 = tpu.memref_squeeze %4 : memref<1x128xf32, #tpu.memory_space<any>> -> memref<128xf32, #tpu.memory_space<any>>
    %c0_i32_3 = arith.constant 0 : i32
    %6 = tpu.memref_slice %arg3[%c0_i32_0, %c0_i32_3] : memref<8x128xf32, #tpu.memory_space<vmem>> -> memref<1x128xf32, #tpu.memory_space<vmem>>
    %7 = tpu.memref_squeeze %6 : memref<1x128xf32, #tpu.memory_space<vmem>> -> memref<128xf32, #tpu.memory_space<vmem>>
    %8 = tpu.memref_slice %arg4[%c0_i32_1] : memref<8x!tpu.dma_semaphore, #tpu.memory_space<semaphore_mem>> -> memref<1x!tpu.dma_semaphore, #tpu.memory_space<semaphore_mem>>
    %9 = tpu.memref_squeeze %8 : memref<1x!tpu.dma_semaphore, #tpu.memory_space<semaphore_mem>> -> memref<!tpu.dma_semaphore, #tpu.memory_space<semaphore_mem>>
    tpu.enqueue_dma source(%5 : memref<128xf32, #tpu.memory_space<any>>) target(%7 : memref<128xf32, #tpu.memory_space<vmem>>) target_semaphore(%9 : memref<!tpu.dma_semaphore, #tpu.memory_space<semaphore_mem>>)
    %c8_i32_4 = arith.constant 8 : i32
    %10 = arith.muli %arg0, %c8_i32_4 : i32
    %c1_i32 = arith.constant 1 : i32
    %11 = arith.addi %10, %c1_i32 : i32
    %12 = arith.index_cast %11 : i32 to index
    %13 = memref.load %arg1[%12] : memref<8xi32, #tpu.memory_space<smem>>
    %c1_i32_5 = arith.constant 1 : i32
    %c1_i32_6 = arith.constant 1 : i32
    %c0_i32_7 = arith.constant 0 : i32
    %14 = tpu.memref_slice %arg2[%13, %c0_i32_7] : memref<11x128xf32, #tpu.memory_space<any>> -> memref<1x128xf32, #tpu.memory_space<any>>
    %15 = tpu.memref_squeeze %14 : memref<1x128xf32, #tpu.memory_space<any>> -> memref<128xf32, #tpu.memory_space<any>>
    %c0_i32_8 = arith.constant 0 : i32
    %16 = tpu.memref_slice %arg3[%c1_i32_5, %c0_i32_8] : memref<8x128xf32, #tpu.memory_space<vmem>> -> memref<1x128xf32, #tpu.memory_space<vmem>>
    %17 = tpu.memref_squeeze %16 : memref<1x128xf32, #tpu.memory_space<vmem>> -> memref<128xf32, #tpu.memory_space<vmem>>
    %18 = tpu.memref_slice %arg4[%c1_i32_6] : memref<8x!tpu.dma_semaphore, #tpu.memory_space<semaphore_mem>> -> memref<1x!tpu.dma_semaphore, #tpu.memory_space<semaphore_mem>>
    %19 = tpu.memref_squeeze %18 : memref<1x!tpu.dma_semaphore, #tpu.memory_space<semaphore_mem>> -> memref<!tpu.dma_semaphore, #tpu.memory_space<semaphore_mem>>
    tpu.enqueue_dma source(%15 : memref<128xf32, #tpu.memory_space<any>>) target(%17 : memref<128xf32, #tpu.memory_space<vmem>>) target_semaphore(%19 : memref<!tpu.dma_semaphore, #tpu.memory_space<semaphore_mem>>)
    %c8_i32_9 = arith.constant 8 : i32
    %20 = arith.muli %arg0, %c8_i32_9 : i32
    %c2_i32 = arith.constant 2 : i32
    %21 = arith.addi %20, %c2_i32 : i32
    %22 = arith.index_cast %21 : i32 to index
    %23 = memref.load %arg1[%22] : memref<8xi32, #tpu.memory_space<smem>>
    %c2_i32_10 = arith.constant 2 : i32
    %c2_i32_11 = arith.constant 2 : i32
    %c0_i32_12 = arith.constant 0 : i32
    %24 = tpu.memref_slice %arg2[%23, %c0_i32_12] : memref<11x128xf32, #tpu.memory_space<any>> -> memref<1x128xf32, #tpu.memory_space<any>>
    %25 = tpu.memref_squeeze %24 : memref<1x128xf32, #tpu.memory_space<any>> -> memref<128xf32, #tpu.memory_space<any>>
    %c0_i32_13 = arith.constant 0 : i32
    %26 = tpu.memref_slice %arg3[%c2_i32_10, %c0_i32_13] : memref<8x128xf32, #tpu.memory_space<vmem>> -> memref<1x128xf32, #tpu.memory_space<vmem>>
    %27 = tpu.memref_squeeze %26 : memref<1x128xf32, #tpu.memory_space<vmem>> -> memref<128xf32, #tpu.memory_space<vmem>>
    %28 = tpu.memref_slice %arg4[%c2_i32_11] : memref<8x!tpu.dma_semaphore, #tpu.memory_space<semaphore_mem>> -> memref<1x!tpu.dma_semaphore, #tpu.memory_space<semaphore_mem>>
    %29 = tpu.memref_squeeze %28 : memref<1x!tpu.dma_semaphore, #tpu.memory_space<semaphore_mem>> -> memref<!tpu.dma_semaphore, #tpu.memory_space<semaphore_mem>>
    tpu.enqueue_dma source(%25 : memref<128xf32, #tpu.memory_space<any>>) target(%27 : memref<128xf32, #tpu.memory_space<vmem>>) target_semaphore(%29 : memref<!tpu.dma_semaphore, #tpu.memory_space<semaphore_mem>>)
    %c8_i32_14 = arith.constant 8 : i32
    %30 = arith.muli %arg0, %c8_i32_14 : i32
    %c3_i32 = arith.constant 3 : i32
    %31 = arith.addi %30, %c3_i32 : i32
    %32 = arith.index_cast %31 : i32 to index
    %33 = memref.load %arg1[%32] : memref<8xi32, #tpu.memory_space<smem>>
    %c3_i32_15 = arith.constant 3 : i32
    %c3_i32_16 = arith.constant 3 : i32
    %c0_i32_17 = arith.constant 0 : i32
    %34 = tpu.memref_slice %arg2[%33, %c0_i32_17] : memref<11x128xf32, #tpu.memory_space<any>> -> memref<1x128xf32, #tpu.memory_space<any>>
    %35 = tpu.memref_squeeze %34 : memref<1x128xf32, #tpu.memory_space<any>> -> memref<128xf32, #tpu.memory_space<any>>
    %c0_i32_18 = arith.constant 0 : i32
    %36 = tpu.memref_slice %arg3[%c3_i32_15, %c0_i32_18] : memref<8x128xf32, #tpu.memory_space<vmem>> -> memref<1x128xf32, #tpu.memory_space<vmem>>
    %37 = tpu.memref_squeeze %36 : memref<1x128xf32, #tpu.memory_space<vmem>> -> memref<128xf32, #tpu.memory_space<vmem>>
    %38 = tpu.memref_slice %arg4[%c3_i32_16] : memref<8x!tpu.dma_semaphore, #tpu.memory_space<semaphore_mem>> -> memref<1x!tpu.dma_semaphore, #tpu.memory_space<semaphore_mem>>
    %39 = tpu.memref_squeeze %38 : memref<1x!tpu.dma_semaphore, #tpu.memory_space<semaphore_mem>> -> memref<!tpu.dma_semaphore, #tpu.memory_space<semaphore_mem>>
    tpu.enqueue_dma source(%35 : memref<128xf32, #tpu.memory_space<any>>) target(%37 : memref<128xf32, #tpu.memory_space<vmem>>) target_semaphore(%39 : memref<!tpu.dma_semaphore, #tpu.memory_space<semaphore_mem>>)
    %c8_i32_19 = arith.constant 8 : i32
    %40 = arith.muli %arg0, %c8_i32_19 : i32
    %c4_i32 = arith.constant 4 : i32
    %41 = arith.addi %40, %c4_i32 : i32
    %42 = arith.index_cast %41 : i32 to index
    %43 = memref.load %arg1[%42] : memref<8xi32, #tpu.memory_space<smem>>
    %c4_i32_20 = arith.constant 4 : i32
    %c4_i32_21 = arith.constant 4 : i32
    %c0_i32_22 = arith.constant 0 : i32
    %44 = tpu.memref_slice %arg2[%43, %c0_i32_22] : memref<11x128xf32, #tpu.memory_space<any>> -> memref<1x128xf32, #tpu.memory_space<any>>
    %45 = tpu.memref_squeeze %44 : memref<1x128xf32, #tpu.memory_space<any>> -> memref<128xf32, #tpu.memory_space<any>>
    %c0_i32_23 = arith.constant 0 : i32
    %46 = tpu.memref_slice %arg3[%c4_i32_20, %c0_i32_23] : memref<8x128xf32, #tpu.memory_space<vmem>> -> memref<1x128xf32, #tpu.memory_space<vmem>>
    %47 = tpu.memref_squeeze %46 : memref<1x128xf32, #tpu.memory_space<vmem>> -> memref<128xf32, #tpu.memory_space<vmem>>
    %48 = tpu.memref_slice %arg4[%c4_i32_21] : memref<8x!tpu.dma_semaphore, #tpu.memory_space<semaphore_mem>> -> memref<1x!tpu.dma_semaphore, #tpu.memory_space<semaphore_mem>>
    %49 = tpu.memref_squeeze %48 : memref<1x!tpu.dma_semaphore, #tpu.memory_space<semaphore_mem>> -> memref<!tpu.dma_semaphore, #tpu.memory_space<semaphore_mem>>
    tpu.enqueue_dma source(%45 : memref<128xf32, #tpu.memory_space<any>>) target(%47 : memref<128xf32, #tpu.memory_space<vmem>>) target_semaphore(%49 : memref<!tpu.dma_semaphore, #tpu.memory_space<semaphore_mem>>)
    %c8_i32_24 = arith.constant 8 : i32
    %50 = arith.muli %arg0, %c8_i32_24 : i32
    %c5_i32 = arith.constant 5 : i32
    %51 = arith.addi %50, %c5_i32 : i32
    %52 = arith.index_cast %51 : i32 to index
    %53 = memref.load %arg1[%52] : memref<8xi32, #tpu.memory_space<smem>>
    %c5_i32_25 = arith.constant 5 : i32
    %c5_i32_26 = arith.constant 5 : i32
    %c0_i32_27 = arith.constant 0 : i32
    %54 = tpu.memref_slice %arg2[%53, %c0_i32_27] : memref<11x128xf32, #tpu.memory_space<any>> -> memref<1x128xf32, #tpu.memory_space<any>>
    %55 = tpu.memref_squeeze %54 : memref<1x128xf32, #tpu.memory_space<any>> -> memref<128xf32, #tpu.memory_space<any>>
    %c0_i32_28 = arith.constant 0 : i32
    %56 = tpu.memref_slice %arg3[%c5_i32_25, %c0_i32_28] : memref<8x128xf32, #tpu.memory_space<vmem>> -> memref<1x128xf32, #tpu.memory_space<vmem>>
    %57 = tpu.memref_squeeze %56 : memref<1x128xf32, #tpu.memory_space<vmem>> -> memref<128xf32, #tpu.memory_space<vmem>>
    %58 = tpu.memref_slice %arg4[%c5_i32_26] : memref<8x!tpu.dma_semaphore, #tpu.memory_space<semaphore_mem>> -> memref<1x!tpu.dma_semaphore, #tpu.memory_space<semaphore_mem>>
    %59 = tpu.memref_squeeze %58 : memref<1x!tpu.dma_semaphore, #tpu.memory_space<semaphore_mem>> -> memref<!tpu.dma_semaphore, #tpu.memory_space<semaphore_mem>>
    tpu.enqueue_dma source(%55 : memref<128xf32, #tpu.memory_space<any>>) target(%57 : memref<128xf32, #tpu.memory_space<vmem>>) target_semaphore(%59 : memref<!tpu.dma_semaphore, #tpu.memory_space<semaphore_mem>>)
    %c8_i32_29 = arith.constant 8 : i32
    %60 = arith.muli %arg0, %c8_i32_29 : i32
    %c6_i32 = arith.constant 6 : i32
    %61 = arith.addi %60, %c6_i32 : i32
    %62 = arith.index_cast %61 : i32 to index
    %63 = memref.load %arg1[%62] : memref<8xi32, #tpu.memory_space<smem>>
    %c6_i32_30 = arith.constant 6 : i32
    %c6_i32_31 = arith.constant 6 : i32
    %c0_i32_32 = arith.constant 0 : i32
    %64 = tpu.memref_slice %arg2[%63, %c0_i32_32] : memref<11x128xf32, #tpu.memory_space<any>> -> memref<1x128xf32, #tpu.memory_space<any>>
    %65 = tpu.memref_squeeze %64 : memref<1x128xf32, #tpu.memory_space<any>> -> memref<128xf32, #tpu.memory_space<any>>
    %c0_i32_33 = arith.constant 0 : i32
    %66 = tpu.memref_slice %arg3[%c6_i32_30, %c0_i32_33] : memref<8x128xf32, #tpu.memory_space<vmem>> -> memref<1x128xf32, #tpu.memory_space<vmem>>
    %67 = tpu.memref_squeeze %66 : memref<1x128xf32, #tpu.memory_space<vmem>> -> memref<128xf32, #tpu.memory_space<vmem>>
    %68 = tpu.memref_slice %arg4[%c6_i32_31] : memref<8x!tpu.dma_semaphore, #tpu.memory_space<semaphore_mem>> -> memref<1x!tpu.dma_semaphore, #tpu.memory_space<semaphore_mem>>
    %69 = tpu.memref_squeeze %68 : memref<1x!tpu.dma_semaphore, #tpu.memory_space<semaphore_mem>> -> memref<!tpu.dma_semaphore, #tpu.memory_space<semaphore_mem>>
    tpu.enqueue_dma source(%65 : memref<128xf32, #tpu.memory_space<any>>) target(%67 : memref<128xf32, #tpu.memory_space<vmem>>) target_semaphore(%69 : memref<!tpu.dma_semaphore, #tpu.memory_space<semaphore_mem>>)
    %c8_i32_34 = arith.constant 8 : i32
    %70 = arith.muli %arg0, %c8_i32_34 : i32
    %c7_i32 = arith.constant 7 : i32
    %71 = arith.addi %70, %c7_i32 : i32
    %72 = arith.index_cast %71 : i32 to index
    %73 = memref.load %arg1[%72] : memref<8xi32, #tpu.memory_space<smem>>
    %c7_i32_35 = arith.constant 7 : i32
    %c7_i32_36 = arith.constant 7 : i32
    %c0_i32_37 = arith.constant 0 : i32
    %74 = tpu.memref_slice %arg2[%73, %c0_i32_37] : memref<11x128xf32, #tpu.memory_space<any>> -> memref<1x128xf32, #tpu.memory_space<any>>
    %75 = tpu.memref_squeeze %74 : memref<1x128xf32, #tpu.memory_space<any>> -> memref<128xf32, #tpu.memory_space<any>>
    %c0_i32_38 = arith.constant 0 : i32
    %76 = tpu.memref_slice %arg3[%c7_i32_35, %c0_i32_38] : memref<8x128xf32, #tpu.memory_space<vmem>> -> memref<1x128xf32, #tpu.memory_space<vmem>>
    %77 = tpu.memref_squeeze %76 : memref<1x128xf32, #tpu.memory_space<vmem>> -> memref<128xf32, #tpu.memory_space<vmem>>
    %78 = tpu.memref_slice %arg4[%c7_i32_36] : memref<8x!tpu.dma_semaphore, #tpu.memory_space<semaphore_mem>> -> memref<1x!tpu.dma_semaphore, #tpu.memory_space<semaphore_mem>>
    %79 = tpu.memref_squeeze %78 : memref<1x!tpu.dma_semaphore, #tpu.memory_space<semaphore_mem>> -> memref<!tpu.dma_semaphore, #tpu.memory_space<semaphore_mem>>
    tpu.enqueue_dma source(%75 : memref<128xf32, #tpu.memory_space<any>>) target(%77 : memref<128xf32, #tpu.memory_space<vmem>>) target_semaphore(%79 : memref<!tpu.dma_semaphore, #tpu.memory_space<semaphore_mem>>)
    %c0_i32_39 = arith.constant 0 : i32
    %c0_i32_40 = arith.constant 0 : i32
    %c0_i32_41 = arith.constant 0 : i32
    %c0_i32_42 = arith.constant 0 : i32
    %80 = tpu.memref_slice %arg2[%c0_i32_39, %c0_i32_42] : memref<11x128xf32, #tpu.memory_space<any>> -> memref<1x128xf32, #tpu.memory_space<any>>
    %81 = tpu.memref_squeeze %80 : memref<1x128xf32, #tpu.memory_space<any>> -> memref<128xf32, #tpu.memory_space<any>>
    %c0_i32_43 = arith.constant 0 : i32
    %82 = tpu.memref_slice %arg3[%c0_i32_40, %c0_i32_43] : memref<8x128xf32, #tpu.memory_space<vmem>> -> memref<1x128xf32, #tpu.memory_space<vmem>>
    %83 = tpu.memref_squeeze %82 : memref<1x128xf32, #tpu.memory_space<vmem>> -> memref<128xf32, #tpu.memory_space<vmem>>
    %84 = tpu.memref_slice %arg4[%c0_i32_41] : memref<8x!tpu.dma_semaphore, #tpu.memory_space<semaphore_mem>> -> memref<1x!tpu.dma_semaphore, #tpu.memory_space<semaphore_mem>>
    %85 = tpu.memref_squeeze %84 : memref<1x!tpu.dma_semaphore, #tpu.memory_space<semaphore_mem>> -> memref<!tpu.dma_semaphore, #tpu.memory_space<semaphore_mem>>
    tpu.wait_dma2 semaphore(%85 : memref<!tpu.dma_semaphore, #tpu.memory_space<semaphore_mem>>) src(%81 : memref<128xf32, #tpu.memory_space<any>>) dst(%83 : memref<128xf32, #tpu.memory_space<vmem>>)
    %c0_i32_44 = arith.constant 0 : i32
    %c1_i32_45 = arith.constant 1 : i32
    %c1_i32_46 = arith.constant 1 : i32
    %c0_i32_47 = arith.constant 0 : i32
    %86 = tpu.memref_slice %arg2[%c0_i32_44, %c0_i32_47] : memref<11x128xf32, #tpu.memory_space<any>> -> memref<1x128xf32, #tpu.memory_space<any>>
    %87 = tpu.memref_squeeze %86 : memref<1x128xf32, #tpu.memory_space<any>> -> memref<128xf32, #tpu.memory_space<any>>
    %c0_i32_48 = arith.constant 0 : i32
    %88 = tpu.memref_slice %arg3[%c1_i32_45, %c0_i32_48] : memref<8x128xf32, #tpu.memory_space<vmem>> -> memref<1x128xf32, #tpu.memory_space<vmem>>
    %89 = tpu.memref_squeeze %88 : memref<1x128xf32, #tpu.memory_space<vmem>> -> memref<128xf32, #tpu.memory_space<vmem>>
    %90 = tpu.memref_slice %arg4[%c1_i32_46] : memref<8x!tpu.dma_semaphore, #tpu.memory_space<semaphore_mem>> -> memref<1x!tpu.dma_semaphore, #tpu.memory_space<semaphore_mem>>
    %91 = tpu.memref_squeeze %90 : memref<1x!tpu.dma_semaphore, #tpu.memory_space<semaphore_mem>> -> memref<!tpu.dma_semaphore, #tpu.memory_space<semaphore_mem>>
    tpu.wait_dma2 semaphore(%91 : memref<!tpu.dma_semaphore, #tpu.memory_space<semaphore_mem>>) src(%87 : memref<128xf32, #tpu.memory_space<any>>) dst(%89 : memref<128xf32, #tpu.memory_space<vmem>>)
    %c0_i32_49 = arith.constant 0 : i32
    %c2_i32_50 = arith.constant 2 : i32
    %c2_i32_51 = arith.constant 2 : i32
    %c0_i32_52 = arith.constant 0 : i32
    %92 = tpu.memref_slice %arg2[%c0_i32_49, %c0_i32_52] : memref<11x128xf32, #tpu.memory_space<any>> -> memref<1x128xf32, #tpu.memory_space<any>>
    %93 = tpu.memref_squeeze %92 : memref<1x128xf32, #tpu.memory_space<any>> -> memref<128xf32, #tpu.memory_space<any>>
    %c0_i32_53 = arith.constant 0 : i32
    %94 = tpu.memref_slice %arg3[%c2_i32_50, %c0_i32_53] : memref<8x128xf32, #tpu.memory_space<vmem>> -> memref<1x128xf32, #tpu.memory_space<vmem>>
    %95 = tpu.memref_squeeze %94 : memref<1x128xf32, #tpu.memory_space<vmem>> -> memref<128xf32, #tpu.memory_space<vmem>>
    %96 = tpu.memref_slice %arg4[%c2_i32_51] : memref<8x!tpu.dma_semaphore, #tpu.memory_space<semaphore_mem>> -> memref<1x!tpu.dma_semaphore, #tpu.memory_space<semaphore_mem>>
    %97 = tpu.memref_squeeze %96 : memref<1x!tpu.dma_semaphore, #tpu.memory_space<semaphore_mem>> -> memref<!tpu.dma_semaphore, #tpu.memory_space<semaphore_mem>>
    tpu.wait_dma2 semaphore(%97 : memref<!tpu.dma_semaphore, #tpu.memory_space<semaphore_mem>>) src(%93 : memref<128xf32, #tpu.memory_space<any>>) dst(%95 : memref<128xf32, #tpu.memory_space<vmem>>)
    %c0_i32_54 = arith.constant 0 : i32
    %c3_i32_55 = arith.constant 3 : i32
    %c3_i32_56 = arith.constant 3 : i32
    %c0_i32_57 = arith.constant 0 : i32
    %98 = tpu.memref_slice %arg2[%c0_i32_54, %c0_i32_57] : memref<11x128xf32, #tpu.memory_space<any>> -> memref<1x128xf32, #tpu.memory_space<any>>
    %99 = tpu.memref_squeeze %98 : memref<1x128xf32, #tpu.memory_space<any>> -> memref<128xf32, #tpu.memory_space<any>>
    %c0_i32_58 = arith.constant 0 : i32
    %100 = tpu.memref_slice %arg3[%c3_i32_55, %c0_i32_58] : memref<8x128xf32, #tpu.memory_space<vmem>> -> memref<1x128xf32, #tpu.memory_space<vmem>>
    %101 = tpu.memref_squeeze %100 : memref<1x128xf32, #tpu.memory_space<vmem>> -> memref<128xf32, #tpu.memory_space<vmem>>
    %102 = tpu.memref_slice %arg4[%c3_i32_56] : memref<8x!tpu.dma_semaphore, #tpu.memory_space<semaphore_mem>> -> memref<1x!tpu.dma_semaphore, #tpu.memory_space<semaphore_mem>>
    %103 = tpu.memref_squeeze %102 : memref<1x!tpu.dma_semaphore, #tpu.memory_space<semaphore_mem>> -> memref<!tpu.dma_semaphore, #tpu.memory_space<semaphore_mem>>
    tpu.wait_dma2 semaphore(%103 : memref<!tpu.dma_semaphore, #tpu.memory_space<semaphore_mem>>) src(%99 : memref<128xf32, #tpu.memory_space<any>>) dst(%101 : memref<128xf32, #tpu.memory_space<vmem>>)
    %c0_i32_59 = arith.constant 0 : i32
    %c4_i32_60 = arith.constant 4 : i32
    %c4_i32_61 = arith.constant 4 : i32
    %c0_i32_62 = arith.constant 0 : i32
    %104 = tpu.memref_slice %arg2[%c0_i32_59, %c0_i32_62] : memref<11x128xf32, #tpu.memory_space<any>> -> memref<1x128xf32, #tpu.memory_space<any>>
    %105 = tpu.memref_squeeze %104 : memref<1x128xf32, #tpu.memory_space<any>> -> memref<128xf32, #tpu.memory_space<any>>
    %c0_i32_63 = arith.constant 0 : i32
    %106 = tpu.memref_slice %arg3[%c4_i32_60, %c0_i32_63] : memref<8x128xf32, #tpu.memory_space<vmem>> -> memref<1x128xf32, #tpu.memory_space<vmem>>
    %107 = tpu.memref_squeeze %106 : memref<1x128xf32, #tpu.memory_space<vmem>> -> memref<128xf32, #tpu.memory_space<vmem>>
    %108 = tpu.memref_slice %arg4[%c4_i32_61] : memref<8x!tpu.dma_semaphore, #tpu.memory_space<semaphore_mem>> -> memref<1x!tpu.dma_semaphore, #tpu.memory_space<semaphore_mem>>
    %109 = tpu.memref_squeeze %108 : memref<1x!tpu.dma_semaphore, #tpu.memory_space<semaphore_mem>> -> memref<!tpu.dma_semaphore, #tpu.memory_space<semaphore_mem>>
    tpu.wait_dma2 semaphore(%109 : memref<!tpu.dma_semaphore, #tpu.memory_space<semaphore_mem>>) src(%105 : memref<128xf32, #tpu.memory_space<any>>) dst(%107 : memref<128xf32, #tpu.memory_space<vmem>>)
    %c0_i32_64 = arith.constant 0 : i32
    %c5_i32_65 = arith.constant 5 : i32
    %c5_i32_66 = arith.constant 5 : i32
    %c0_i32_67 = arith.constant 0 : i32
    %110 = tpu.memref_slice %arg2[%c0_i32_64, %c0_i32_67] : memref<11x128xf32, #tpu.memory_space<any>> -> memref<1x128xf32, #tpu.memory_space<any>>
    %111 = tpu.memref_squeeze %110 : memref<1x128xf32, #tpu.memory_space<any>> -> memref<128xf32, #tpu.memory_space<any>>
    %c0_i32_68 = arith.constant 0 : i32
    %112 = tpu.memref_slice %arg3[%c5_i32_65, %c0_i32_68] : memref<8x128xf32, #tpu.memory_space<vmem>> -> memref<1x128xf32, #tpu.memory_space<vmem>>
    %113 = tpu.memref_squeeze %112 : memref<1x128xf32, #tpu.memory_space<vmem>> -> memref<128xf32, #tpu.memory_space<vmem>>
    %114 = tpu.memref_slice %arg4[%c5_i32_66] : memref<8x!tpu.dma_semaphore, #tpu.memory_space<semaphore_mem>> -> memref<1x!tpu.dma_semaphore, #tpu.memory_space<semaphore_mem>>
    %115 = tpu.memref_squeeze %114 : memref<1x!tpu.dma_semaphore, #tpu.memory_space<semaphore_mem>> -> memref<!tpu.dma_semaphore, #tpu.memory_space<semaphore_mem>>
    tpu.wait_dma2 semaphore(%115 : memref<!tpu.dma_semaphore, #tpu.memory_space<semaphore_mem>>) src(%111 : memref<128xf32, #tpu.memory_space<any>>) dst(%113 : memref<128xf32, #tpu.memory_space<vmem>>)
    %c0_i32_69 = arith.constant 0 : i32
    %c6_i32_70 = arith.constant 6 : i32
    %c6_i32_71 = arith.constant 6 : i32
    %c0_i32_72 = arith.constant 0 : i32
    %116 = tpu.memref_slice %arg2[%c0_i32_69, %c0_i32_72] : memref<11x128xf32, #tpu.memory_space<any>> -> memref<1x128xf32, #tpu.memory_space<any>>
    %117 = tpu.memref_squeeze %116 : memref<1x128xf32, #tpu.memory_space<any>> -> memref<128xf32, #tpu.memory_space<any>>
    %c0_i32_73 = arith.constant 0 : i32
    %118 = tpu.memref_slice %arg3[%c6_i32_70, %c0_i32_73] : memref<8x128xf32, #tpu.memory_space<vmem>> -> memref<1x128xf32, #tpu.memory_space<vmem>>
    %119 = tpu.memref_squeeze %118 : memref<1x128xf32, #tpu.memory_space<vmem>> -> memref<128xf32, #tpu.memory_space<vmem>>
    %120 = tpu.memref_slice %arg4[%c6_i32_71] : memref<8x!tpu.dma_semaphore, #tpu.memory_space<semaphore_mem>> -> memref<1x!tpu.dma_semaphore, #tpu.memory_space<semaphore_mem>>
    %121 = tpu.memref_squeeze %120 : memref<1x!tpu.dma_semaphore, #tpu.memory_space<semaphore_mem>> -> memref<!tpu.dma_semaphore, #tpu.memory_space<semaphore_mem>>
    tpu.wait_dma2 semaphore(%121 : memref<!tpu.dma_semaphore, #tpu.memory_space<semaphore_mem>>) src(%117 : memref<128xf32, #tpu.memory_space<any>>) dst(%119 : memref<128xf32, #tpu.memory_space<vmem>>)
    %c0_i32_74 = arith.constant 0 : i32
    %c7_i32_75 = arith.constant 7 : i32
    %c7_i32_76 = arith.constant 7 : i32
    %c0_i32_77 = arith.constant 0 : i32
    %122 = tpu.memref_slice %arg2[%c0_i32_74, %c0_i32_77] : memref<11x128xf32, #tpu.memory_space<any>> -> memref<1x128xf32, #tpu.memory_space<any>>
    %123 = tpu.memref_squeeze %122 : memref<1x128xf32, #tpu.memory_space<any>> -> memref<128xf32, #tpu.memory_space<any>>
    %c0_i32_78 = arith.constant 0 : i32
    %124 = tpu.memref_slice %arg3[%c7_i32_75, %c0_i32_78] : memref<8x128xf32, #tpu.memory_space<vmem>> -> memref<1x128xf32, #tpu.memory_space<vmem>>
    %125 = tpu.memref_squeeze %124 : memref<1x128xf32, #tpu.memory_space<vmem>> -> memref<128xf32, #tpu.memory_space<vmem>>
    %126 = tpu.memref_slice %arg4[%c7_i32_76] : memref<8x!tpu.dma_semaphore, #tpu.memory_space<semaphore_mem>> -> memref<1x!tpu.dma_semaphore, #tpu.memory_space<semaphore_mem>>
    %127 = tpu.memref_squeeze %126 : memref<1x!tpu.dma_semaphore, #tpu.memory_space<semaphore_mem>> -> memref<!tpu.dma_semaphore, #tpu.memory_space<semaphore_mem>>
    tpu.wait_dma2 semaphore(%127 : memref<!tpu.dma_semaphore, #tpu.memory_space<semaphore_mem>>) src(%123 : memref<128xf32, #tpu.memory_space<any>>) dst(%125 : memref<128xf32, #tpu.memory_space<vmem>>)
    return
  }
  func.func @transform_1(%arg0: i32, %arg1: memref<8xi32, #tpu.memory_space<smem>>) -> (i32, i32) {
    %c0_i32 = arith.constant 0 : i32
    %c0_i32_0 = arith.constant 0 : i32
    return %arg0, %c0_i32 : i32, i32
  }
}

</mosaic_0001>

<llo_original>
// kernel: tpu_custom_call.1
$region0: #{tpu_custom_call.1}
  #allocation0 [shape = 'u32[]', space=smem, size = 0x4, offset = 0x4, fixed_abs, tag = 'smem constant byte address 0x4 - core index']
  #allocation1 [shape = 'u32[144,128]{1,0:T(1,128)}', space=vmem, size = 0x12000, scoped, tag = 'internal scratch']
  #allocation2 [shape = 's32[8]{0}', space=sflag, size = 0x20, scoped, tag = 'scratch operand']
  #allocation3 [shape = 's32[1]{0}', space=sflag, size = 0x4, scoped, tag = 'scoped memory for tpu_custom_call.1']
  #allocation4 [shape = 'u8[512]{0}', space=smem, size = 0x200, scoped, tag = 'prefetched SMEM operand 0']
  #allocation7 [shape = 's32[]', space=sflag, size = 0x4, offset = 0, fixed_abs, tag = 'sflag constant byte address 0x0 - dummy sync flag']
  #allocation8 [shape = 's32[]', space=sflag, size = 0x4, offset = 0, fixed_abs, tag = 'sflag constant byte address 0x0 - dummy sync flag']
  #allocation9 [shape = 'u32[]', space=smem, size = 0x4, offset = 0x44, fixed_abs, tag = 'smem constant byte address 0x44 - assertion arg 0']
  #allocation10 [shape = 'u32[]', space=smem, size = 0x4, offset = 0x48, fixed_abs, tag = 'smem constant byte address 0x48 - assertion arg 1']
  #allocation11 [shape = 's32[]', space=sflag, size = 0x4, offset = 0, fixed_abs, tag = 'sflag constant byte address 0x0 - dummy sync flag']
  #allocation12 [shape = 's32[]', space=sflag, size = 0x4, offset = 0, fixed_abs, tag = 'sflag constant byte address 0x0 - dummy sync flag']
  #allocation13 [shape = 's32[]', space=sflag, size = 0x4, offset = 0, fixed_abs, tag = 'sflag constant byte address 0x0 - dummy sync flag']
  #allocation14 [shape = 's32[]', space=sflag, size = 0x4, offset = 0, fixed_abs, tag = 'sflag constant byte address 0x0 - dummy sync flag']
  #allocation15 [shape = 's32[]', space=sflag, size = 0x4, offset = 0, fixed_abs, tag = 'sflag constant byte address 0x0 - dummy sync flag']
  #allocation16 [shape = 's32[]', space=sflag, size = 0x4, offset = 0, fixed_abs, tag = 'sflag constant byte address 0x0 - dummy sync flag']
  #allocation17 [shape = 's32[]', space=sflag, size = 0x4, offset = 0, fixed_abs, tag = 'sflag constant byte address 0x0 - dummy sync flag']
  #allocation18 [shape = 's32[]', space=sflag, size = 0x4, offset = 0, fixed_abs, tag = 'sflag constant byte address 0x0 - dummy sync flag']
  #allocation19 [shape = 's32[]', space=sflag, size = 0x4, offset = 0, fixed_abs, tag = 'sflag constant byte address 0x0 - dummy sync flag']
  #allocation20 [shape = 's32[]', space=sflag, size = 0x4, offset = 0, fixed_abs, tag = 'sflag constant byte address 0x0 - dummy sync flag']
  #allocation21 [shape = 's32[]', space=sflag, size = 0x4, offset = 0, fixed_abs, tag = 'sflag constant byte address 0x0 - dummy sync flag']
  #allocation22 [shape = 's32[]', space=sflag, size = 0x4, offset = 0, fixed_abs, tag = 'sflag constant byte address 0x0 - dummy sync flag']
  #allocation23 [shape = 's32[]', space=sflag, size = 0x4, offset = 0, fixed_abs, tag = 'sflag constant byte address 0x0 - dummy sync flag']
  #allocation24 [shape = 's32[]', space=sflag, size = 0x4, offset = 0, fixed_abs, tag = 'sflag constant byte address 0x0 - dummy sync flag']
  %s0 = inlined_call_operand.hbm [shape: s32[8], index: 0, kind: input, shape index: {}]
  %s1 = inlined_call_operand.hbm [shape: f32[11,128], index: 1, kind: input, shape index: {}]
  %s2 = inlined_call_operand.hbm [shape: f32[8,128], index: 2, kind: output, shape index: {}]
  %s3 = sld [smem:[#allocation0]]
  $region42: #{tpu_custom_call.1} parent=0
    _
  %s5 = ssub.s32 1, %s3
  %s6 = scalar_select 0, %s5, %s3
  %8 = dma.hbm_to_smem %s0, 16, [#allocation4], [#allocation3]
  %9 = dma.done [#allocation3], 16
  %10 = sfence
  $region1: #{tpu_custom_call.1} parent=0
    #allocation5 [shape = 'u8[4096]{0}', space=vmem, size = 0x1000, scoped, tag = 'output window, operand 0, single buffered']
    #allocation6 [shape = 's32[1]{0}', space=sflag, size = 0x4, scoped, tag = 'scoped memory for tpu_custom_call.1']
    %11 = vsyncpa [#allocation6], 0
    %s12 = smul.u32 0, 8
    %s13 = sld [smem:[#allocation4 + %s12]]
    %s14 = smul.addr %s13, 16
    %s15 = scalar_lea.hbm %s1, %s14
    // Predicated region
    $region2: #{tpu_custom_call.1} parent=1 // pred_check
      _
    $region3: #{tpu_custom_call.1} parent=1 // pred_check_branch
      %17 = sbr.rel target = $region5
    $region4: #{tpu_custom_call.1} parent=1 // pred_region
      %18 = sst [smem:[#allocation9]] [#allocation8]
      %19 = sst [smem:[#allocation10]] [#allocation7]
    $region5: #{tpu_custom_call.1} parent=1 // pred_fallthru
      _
    %21 = shalt.err (0)
    %s23 = sshll.u32 [#allocation5], 4
    %s24 = int_to_ptr.vmem [resolvable:$true] %s23
    %26 = dma.hbm_to_vmem [thread:$0]  %s15, 16, %s24, [#allocation2]
    %s27 = sadd.s32 %s12, 1
    %s28 = sld [smem:[#allocation4 + %s27]]
    %s29 = smul.addr %s28, 16
    %s30 = scalar_lea.hbm %s1, %s29
    %s31 = scalar_lea.vmem [#allocation5], 1
    %s32 = scalar_lea.sflag [#allocation2], 1
    // Predicated region
    $region6: #{tpu_custom_call.1} parent=1 // pred_check
      _
    $region7: #{tpu_custom_call.1} parent=1 // pred_check_branch
      %34 = sbr.rel target = $region9
    $region8: #{tpu_custom_call.1} parent=1 // pred_region
      %35 = sst [smem:[#allocation9]] [#allocation12]
      %36 = sst [smem:[#allocation10]] [#allocation11]
    $region9: #{tpu_custom_call.1} parent=1 // pred_fallthru
      _
    %38 = shalt.err (0)
    %s40 = sshll.u32 %s31, 4
    %s41 = int_to_ptr.vmem [resolvable:$true] %s40
    %43 = dma.hbm_to_vmem [thread:$0]  %s30, 16, %s41, %s32
    %s44 = sadd.s32 %s12, 2
    %s45 = sld [smem:[#allocation4 + %s44]]
    %s46 = smul.addr %s45, 16
    %s47 = scalar_lea.hbm %s1, %s46
    %s48 = scalar_lea.vmem [#allocation5], 2
    %s49 = scalar_lea.sflag [#allocation2], 2
    // Predicated region
    $region10: #{tpu_custom_call.1} parent=1 // pred_check
      _
    $region11: #{tpu_custom_call.1} parent=1 // pred_check_branch
      %51 = sbr.rel target = $region13
    $region12: #{tpu_custom_call.1} parent=1 // pred_region
      %52 = sst [smem:[#allocation9]] [#allocation14]
      %53 = sst [smem:[#allocation10]] [#allocation13]
    $region13: #{tpu_custom_call.1} parent=1 // pred_fallthru
      _
    %55 = shalt.err (0)
    %s57 = sshll.u32 %s48, 4
    %s58 = int_to_ptr.vmem [resolvable:$true] %s57
    %60 = dma.hbm_to_vmem [thread:$0]  %s47, 16, %s58, %s49
    %s61 = sadd.s32 %s12, 3
    %s62 = sld [smem:[#allocation4 + %s61]]
    %s63 = smul.addr %s62, 16
    %s64 = scalar_lea.hbm %s1, %s63
    %s65 = scalar_lea.vmem [#allocation5], 3
    %s66 = scalar_lea.sflag [#allocation2], 3
    // Predicated region
    $region14: #{tpu_custom_call.1} parent=1 // pred_check
      _
    $region15: #{tpu_custom_call.1} parent=1 // pred_check_branch
      %68 = sbr.rel target = $region17
    $region16: #{tpu_custom_call.1} parent=1 // pred_region
      %69 = sst [smem:[#allocation9]] [#allocation16]
      %70 = sst [smem:[#allocation10]] [#allocation15]
    $region17: #{tpu_custom_call.1} parent=1 // pred_fallthru
      _
    %72 = shalt.err (0)
    %s74 = sshll.u32 %s65, 4
    %s75 = int_to_ptr.vmem [resolvable:$true] %s74
    %77 = dma.hbm_to_vmem [thread:$0]  %s64, 16, %s75, %s66
    %s78 = sadd.s32 %s12, 4
    %s79 = sld [smem:[#allocation4 + %s78]]
    %s80 = smul.addr %s79, 16
    %s81 = scalar_lea.hbm %s1, %s80
    %s82 = scalar_lea.vmem [#allocation5], 4
    %s83 = scalar_lea.sflag [#allocation2], 4
    // Predicated region
    $region18: #{tpu_custom_call.1} parent=1 // pred_check
      _
    $region19: #{tpu_custom_call.1} parent=1 // pred_check_branch
      %85 = sbr.rel target = $region21
    $region20: #{tpu_custom_call.1} parent=1 // pred_region
      %86 = sst [smem:[#allocation9]] [#allocation18]
      %87 = sst [smem:[#allocation10]] [#allocation17]
    $region21: #{tpu_custom_call.1} parent=1 // pred_fallthru
      _
    %89 = shalt.err (0)
    %s91 = sshll.u32 %s82, 4
    %s92 = int_to_ptr.vmem [resolvable:$true] %s91
    %94 = dma.hbm_to_vmem [thread:$0]  %s81, 16, %s92, %s83
    %s95 = sadd.s32 %s12, 5
    %s96 = sld [smem:[#allocation4 + %s95]]
    %s97 = smul.addr %s96, 16
    %s98 = scalar_lea.hbm %s1, %s97
    %s99 = scalar_lea.vmem [#allocation5], 5
    %s100 = scalar_lea.sflag [#allocation2], 5
    // Predicated region
    $region22: #{tpu_custom_call.1} parent=1 // pred_check
      _
    $region23: #{tpu_custom_call.1} parent=1 // pred_check_branch
      %102 = sbr.rel target = $region25
    $region24: #{tpu_custom_call.1} parent=1 // pred_region
      %103 = sst [smem:[#allocation9]] [#allocation20]
      %104 = sst [smem:[#allocation10]] [#allocation19]
    $region25: #{tpu_custom_call.1} parent=1 // pred_fallthru
      _
    %106 = shalt.err (0)
    %s108 = sshll.u32 %s99, 4
    %s109 = int_to_ptr.vmem [resolvable:$true] %s108
    %111 = dma.hbm_to_vmem [thread:$0]  %s98, 16, %s109, %s100
    %s112 = sadd.s32 %s12, 6
    %s113 = sld [smem:[#allocation4 + %s112]]
    %s114 = smul.addr %s113, 16
    %s115 = scalar_lea.hbm %s1, %s114
    %s116 = scalar_lea.vmem [#allocation5], 6
    %s117 = scalar_lea.sflag [#allocation2], 6
    // Predicated region
    $region26: #{tpu_custom_call.1} parent=1 // pred_check
      _
    $region27: #{tpu_custom_call.1} parent=1 // pred_check_branch
      %119 = sbr.rel target = $region29
    $region28: #{tpu_custom_call.1} parent=1 // pred_region
      %120 = sst [smem:[#allocation9]] [#allocation22]
      %121 = sst [smem:[#allocation10]] [#allocation21]
    $region29: #{tpu_custom_call.1} parent=1 // pred_fallthru
      _
    %123 = shalt.err (0)
    %s125 = sshll.u32 %s116, 4
    %s126 = int_to_ptr.vmem [resolvable:$true] %s125
    %128 = dma.hbm_to_vmem [thread:$0]  %s115, 16, %s126, %s117
    %s129 = sadd.s32 %s12, 7
    %s130 = sld [smem:[#allocation4 + %s129]]
    %s131 = smul.addr %s130, 16
    %s132 = scalar_lea.hbm %s1, %s131
    %s133 = scalar_lea.vmem [#allocation5], 7
    %s134 = scalar_lea.sflag [#allocation2], 7
    // Predicated region
    $region30: #{tpu_custom_call.1} parent=1 // pred_check
      _
    $region31: #{tpu_custom_call.1} parent=1 // pred_check_branch
      %136 = sbr.rel target = $region33
    $region32: #{tpu_custom_call.1} parent=1 // pred_region
      %137 = sst [smem:[#allocation9]] [#allocation24]
      %138 = sst [smem:[#allocation10]] [#allocation23]
    $region33: #{tpu_custom_call.1} parent=1 // pred_fallthru
      _
    %140 = shalt.err (0)
    %s142 = sshll.u32 %s133, 4
    %s143 = int_to_ptr.vmem [resolvable:$true] %s142
    %145 = dma.hbm_to_vmem [thread:$0]  %s132, 16, %s143, %s134
    %147 = dma.done [#allocation2], 16
    %149 = dma.done %s32, 16
    %151 = dma.done %s49, 16
    %153 = dma.done %s66, 16
    %155 = dma.done %s83, 16
    %157 = dma.done %s100, 16
    %159 = dma.done %s117, 16
    %161 = dma.done %s134, 16
    // Predicated region
    $region34: #{tpu_custom_call.1} parent=1 // pred_check
      _
    $region35: #{tpu_custom_call.1} parent=1 // pred_check_branch
      %163 = sbr.rel (0) target = $region37
    $region36: #{tpu_custom_call.1} parent=1 // pred_region
      %s165 = ssub.s32 128, 128
      %166 = vsyncadd [#allocation6], %s165
      %s168 = sshll.u32 [#allocation5], 4
      %s169 = int_to_ptr.vmem [resolvable:$true] %s168
      %171 = dma.vmem_to_hbm [thread:$0]  %s169, 128, %s2, [#allocation6]
    $region37: #{tpu_custom_call.1} parent=1 // pred_fallthru
      _
    // Predicated region
    $region38: #{tpu_custom_call.1} parent=1 // pred_check
      _
    $region39: #{tpu_custom_call.1} parent=1 // pred_check_branch
      %173 = sbr.rel (0) target = $region41
    $region40: #{tpu_custom_call.1} parent=1 // pred_region
      %174 = dma.done [#allocation6], 128
    $region41: #{tpu_custom_call.1} parent=1 // pred_fallthru
      _
    %175 = vsyncpa [#allocation6], 1
  %176 = vsyncmov [#allocation2]
  %s177 = vpop.sfrf %176
  %p178 = scmp.eq.s32.totalorder %s177, 0
  %p179 = pneg %p178
  %181 = shalt.err (%p179)
  %s182 = scalar_lea.sflag [#allocation2], 1
  %183 = vsyncmov %s182
  %s184 = vpop.sfrf %183
  %p185 = scmp.eq.s32.totalorder %s184, 0
  %p186 = pneg %p185
  %188 = shalt.err (%p186)
  %s189 = scalar_lea.sflag [#allocation2], 2
  %190 = vsyncmov %s189
  %s191 = vpop.sfrf %190
  %p192 = scmp.eq.s32.totalorder %s191, 0
  %p193 = pneg %p192
  %195 = shalt.err (%p193)
  %s196 = scalar_lea.sflag [#allocation2], 3
  %197 = vsyncmov %s196
  %s198 = vpop.sfrf %197
  %p199 = scmp.eq.s32.totalorder %s198, 0
  %p200 = pneg %p199
  %202 = shalt.err (%p200)
  %s203 = scalar_lea.sflag [#allocation2], 4
  %204 = vsyncmov %s203
  %s205 = vpop.sfrf %204
  %p206 = scmp.eq.s32.totalorder %s205, 0
  %p207 = pneg %p206
  %209 = shalt.err (%p207)
  %s210 = scalar_lea.sflag [#allocation2], 5
  %211 = vsyncmov %s210
  %s212 = vpop.sfrf %211
  %p213 = scmp.eq.s32.totalorder %s212, 0
  %p214 = pneg %p213
  %216 = shalt.err (%p214)
  %s217 = scalar_lea.sflag [#allocation2], 6
  %218 = vsyncmov %s217
  %s219 = vpop.sfrf %218
  %p220 = scmp.eq.s32.totalorder %s219, 0
  %p221 = pneg %p220
  %223 = shalt.err (%p221)
  %s224 = scalar_lea.sflag [#allocation2], 7
  %225 = vsyncmov %s224
  %s226 = vpop.sfrf %225
  %p227 = scmp.eq.s32.totalorder %s226, 0
  %p228 = pneg %p227
  %230 = shalt.err (%p228)

</llo_original>
